<compile_context>
chip_gen: v5e
topology: v5e:2x2
jax: 0.10.0
libtpu: 0.0.40
codegen_flags: <defaults>
</compile_context>

<pallas_src>
import functools
import math
import numpy as np
import jax
import jax.numpy as jnp
from jax.experimental import pallas as pl
from jax.experimental.pallas import tpu as pltpu

LANE = 128           # padded feature width (in_feats, hs1, hs2 are all well below)
DEG_LANE = LANE - 1  # reserved lane: carries the selection mask so A@x yields deg


# --------------------------------------------------------------------------- kernels

def layer_kernel(inv_nsel, a_ref, x_ref, sin_ref, mask_ref,
                 wl_ref, wr_ref, b_ref, gamma_ref, beta_ref,
                 wrel_ref, wroot_ref, brel_ref, h_ref, s_ref):
    """Fused: (x * prev_pool_score) -> SAGEConv(mean) -> BatchNorm1d -> ReLU
    -> SAGPooling score GNN (GraphConv(H, 1, aggr='add') + tanh).

    Pooling is expressed via `mask`/`sin` (zero on dropped nodes); no adjacency
    filtering/gather is needed.  `inv_nsel` = 1 / (#selected nodes) is static.
    """
    a = a_ref[...]                                    # (N, N) bf16 — loaded once per layer
    mask = mask_ref[...]                              # (N, 1) f32, binary
    x = x_ref[...] * sin_ref[...]                     # fold prev mask*score (f32)

    # deg on the MXU: lane DEG_LANE of x carries the mask, so agg[:, DEG_LANE]
    # is the in-degree within the filtered graph.
    lane = jax.lax.broadcasted_iota(jnp.int32, x.shape, 1)
    x = jnp.where(lane == DEG_LANE, mask, x)
    xb = x.astype(jnp.bfloat16)                       # MXU operand; math stays f32

    # SAGEConv(aggr='mean'): out = lin_l(mean_j x_j) + lin_r(x_i)
    agg = jnp.dot(a, xb, preferred_element_type=jnp.float32)          # (N, Fp)
    deg = agg[:, DEG_LANE:DEG_LANE + 1]                               # (N, 1)
    agg = agg * pl.reciprocal(jnp.maximum(deg, 1.0), approx=True)     # EUP divide
    h = (jnp.dot(agg.astype(jnp.bfloat16), wl_ref[...],
                 preferred_element_type=jnp.float32)
         + jnp.dot(xb, wr_ref[...], preferred_element_type=jnp.float32)
         + b_ref[...])

    # BatchNorm1d (training-mode stats over the *selected* node axis), one sweep.
    hm = h * mask
    mean = jnp.sum(hm, axis=0, keepdims=True) * inv_nsel
    msq = jnp.sum(hm * h, axis=0, keepdims=True) * inv_nsel
    var = jnp.maximum(msq - mean * mean, 0.0)
    h = (h - mean) * jax.lax.rsqrt(var + 1e-5) * gamma_ref[...] + beta_ref[...]
    h = jnp.maximum(h, 0.0)
    h_ref[...] = h

    # SAGPooling score: s_i = tanh(lin_rel(sum_j h_j) + lin_root(h_i)); features
    # first (N^2*1 FLOPs), dropped nodes removed from the sum by the mask.
    hb = h.astype(jnp.bfloat16)
    z = jnp.dot(hb, wrel_ref[...], preferred_element_type=jnp.float32) * mask   # (N, 1)
    r = jnp.dot(hb, wroot_ref[...], preferred_element_type=jnp.float32)         # (N, 1)
    s_ref[...] = jnp.tanh(jnp.dot(a, z.astype(jnp.bfloat16),
                                  preferred_element_type=jnp.float32)
                          + r + brel_ref[...])


def head_kernel(m_ref, x_ref, s_ref, w_ref, b_ref, o_ref):
    """Fused: (x * pool2_mask*score) -> global_mean_pool -> ReLU -> Linear -> softmax."""
    xs = (x_ref[...] * s_ref[...]).astype(jnp.bfloat16)
    pooled = jnp.dot(m_ref[...], xs, preferred_element_type=jnp.float32)    # (G, Fp)
    pooled = jnp.maximum(pooled, 0.0)
    logits = jnp.dot(pooled.astype(jnp.bfloat16), w_ref[...],
                     preferred_element_type=jnp.float32) + b_ref[...]
    m = jnp.max(logits, axis=1, keepdims=True)
    e = jnp.exp(logits - m)
    o_ref[...] = e / jnp.sum(e, axis=1, keepdims=True)   # exact divide: rows sum to 1


# --------------------------------------------------------------------------- wrappers

def _vmem_capacity_bytes():
    try:
        cap = getattr(pltpu.get_tpu_info(), "vmem_capacity_bytes", None)
        if cap:
            return int(cap)
    except Exception:
        pass
    return 64 << 20            # conservative fallback: v7x per-TC VMEM


def _vmem_limit_bytes(args, outs):
    nb = sum(int(a.size) * a.dtype.itemsize for a in args)
    nb += sum(int(np.prod(o.shape)) * np.dtype(o.dtype).itemsize for o in outs)
    cap = _vmem_capacity_bytes() - (16 << 20)    # headroom for compiler scratch
    want = 2 * nb + (2 << 20)                    # gridless path: no double-buffering
    return int(min(max(16 << 20, want), max(cap, 16 << 20)))


def _whole_array_call(kernel, out_shape, *args):
    # Small/medium N: whole-array blocks resident in VMEM, single grid point, so
    # A is DMA'd from HBM once and reused for both the aggregation and score matmuls.
    multi = isinstance(out_shape, (tuple, list))
    outs = tuple(out_shape) if multi else (out_shape,)
    vmem = pl.BlockSpec(memory_space=pltpu.MemorySpace.VMEM)
    return pl.pallas_call(
        kernel,
        out_shape=out_shape,
        in_specs=[vmem] * len(args),
        out_specs=tuple([vmem] * len(outs)) if multi else vmem,
        compiler_params=pltpu.CompilerParams(
            vmem_limit_bytes=_vmem_limit_bytes(args, outs)),
    )(*args)


def fused_layer(A, x, s_in, mask, p, n_sel):
    n, fp = x.shape
    kern = functools.partial(layer_kernel, 1.0 / float(n_sel))
    return _whole_array_call(
        kern,
        (jax.ShapeDtypeStruct((n, fp), jnp.float32),
         jax.ShapeDtypeStruct((n, 1), jnp.float32)),
        A, x, s_in, mask, p["wl"], p["wr"], p["b"], p["gamma"], p["beta"],
        p["wrel"], p["wroot"], p["brel"])


def head(M, x, s, w, b):
    return _whole_array_call(
        head_kernel, jax.ShapeDtypeStruct((M.shape[0], w.shape[1]), jnp.float32),
        M, x, s, w, b)


# --------------------------------------------------------------------------- glue

def build_adjacency(edge_index, num_nodes):
    src, tgt = edge_index[0], edge_index[1]
    return jnp.zeros((num_nodes, num_nodes), jnp.float32).at[tgt, src].add(1.0)


def sag_topk_mask(score, prev_mask, nodes_per_graph, num_graphs, k):
    """PyG SAGPooling top-k selection over the full node set: returns the new
    binary mask, mask*score (the multiplier for the next layer), and the selected
    original node ids (per graph, descending score — like PyG topk).
    No O(N^2) adjacency gather: column/row filtering is done by the mask."""
    masked = jnp.where(prev_mask > 0, score, -2.0)       # tanh scores live in (-1, 1)
    s2d = masked[:, 0].reshape(num_graphs, nodes_per_graph)
    _, idx = jax.lax.top_k(s2d, k)
    perm = (idx + (jnp.arange(num_graphs) * nodes_per_graph)[:, None]).reshape(-1)
    new_mask = jnp.zeros((score.shape[0], 1), jnp.float32).at[perm, 0].set(1.0)
    return new_mask, new_mask * score, perm
    # TODO(synk): ragged / variable-size graphs (dynamic k) have no static-shape
    # on-device equivalent; they would need host glue or an in-kernel sort.


def mean_pool_matrix(num_graphs, nodes_per_graph, k_sel):
    batch = jnp.repeat(jnp.arange(num_graphs), nodes_per_graph)
    onehot = (batch[None, :] == jnp.arange(num_graphs)[:, None]).astype(jnp.float32)
    return onehot / float(k_sel)      # selection handled by mask*score multiplier


def _lin_init(key, fin, fout):
    kw, kb = jax.random.split(key)
    s = 1.0 / math.sqrt(fin)
    w = jax.random.uniform(kw, (fin, fout), jnp.float32, -s, s)
    b = jax.random.uniform(kb, (1, fout), jnp.float32, -s, s)
    return w, b


# --------------------------------------------------------------------------- model

class Net:
    def __init__(self, in_feats, key):
        hs1 = in_feats * 2
        hs2 = hs1 * 2
        fp = LANE
        assert max(in_feats, hs1, hs2) <= DEG_LANE   # lane 127 reserved for degree
        self.fp = fp
        self.dims = (in_feats, hs1, hs2)
        ks = jax.random.split(key, 9)

        def pad_mat(w, fin, fout):       # (fin,fout) -> (fp,fp), bf16 MXU operand
            return (jnp.zeros((fp, fp), jnp.float32)
                    .at[:fin, :fout].set(w).astype(jnp.bfloat16))

        def pad_row(v, fout):
            return jnp.zeros((1, fp), jnp.float32).at[:, :fout].set(v)

        def pad_col(w, fin):
            return (jnp.zeros((fp, 1), jnp.float32)
                    .at[:fin, :].set(w).astype(jnp.bfloat16))

        self.raw, self.kern = {}, {}
        layer_dims = ((in_feats, hs1, 0), (hs1, hs2, 4))
        for li, (fin, fout, k0) in enumerate(layer_dims, start=1):
            wl, bl = _lin_init(ks[k0 + 0], fin, fout)     # SAGEConv lin_l (bias)
            wr, _ = _lin_init(ks[k0 + 1], fin, fout)      # SAGEConv lin_r (no bias)
            wrel, brel = _lin_init(ks[k0 + 2], fout, 1)   # SAGPool GraphConv lin_rel
            wroot, _ = _lin_init(ks[k0 + 3], fout, 1)     # SAGPool GraphConv lin_root
            gamma = jnp.ones((1, fout), jnp.float32)
            beta = jnp.zeros((1, fout), jnp.float32)
            self.raw[li] = dict(wl=wl, bl=bl, wr=wr, gamma=gamma, beta=beta,
                                wrel=wrel, brel=brel, wroot=wroot)
            self.kern[li] = dict(
                wl=pad_mat(wl, fin, fout), wr=pad_mat(wr, fin, fout),
                b=pad_row(bl, fout), gamma=pad_row(gamma, fout),
                beta=jnp.zeros((1, fp), jnp.float32),
                wrel=pad_col(wrel, fout), wroot=pad_col(wroot, fout), brel=brel)

        lw, lb = _lin_init(ks[8], hs2, 2)
        self.raw["lin"] = (lw, lb)
        self.lin_w = (jnp.zeros((fp, 2), jnp.float32)
                      .at[:hs2, :].set(lw).astype(jnp.bfloat16))
        self.lin_b = lb

    def forward(self, x, edge_index, nodes_per_graph, num_graphs, ratio=0.5,
                with_aux=False):
        N, fp = x.shape[0], self.fp
        A = build_adjacency(edge_index, N).astype(jnp.bfloat16)  # integer counts: exact
        xp = jnp.zeros((N, fp), jnp.float32).at[:, :x.shape[1]].set(x)  # lane-pad
        ones = jnp.ones((N, 1), jnp.float32)

        # layer 1: fused conv + bn + relu + pool-score (all nodes selected)
        h, score = fused_layer(A, xp, ones, ones, self.kern[1], n_sel=N)
        k1 = int(math.ceil(ratio * nodes_per_graph))
        mask1, smask1, perm1 = sag_topk_mask(score, ones, nodes_per_graph,
                                             num_graphs, k1)

        # layer 2 over the full node set: pool-1 is applied as mask/score
        # multipliers (A_sel @ x_sel == A @ (mask ⊙ x)) — no adjacency gathers.
        h, score = fused_layer(A, h, smask1, mask1, self.kern[2],
                               n_sel=num_graphs * k1)
        k2 = int(math.ceil(ratio * k1))
        mask2, smask2, perm2 = sag_topk_mask(score, mask1, nodes_per_graph,
                                             num_graphs, k2)

        # global_mean_pool -> ReLU -> Linear -> softmax (pool-2 folded into head)
        M = mean_pool_matrix(num_graphs, nodes_per_graph, k2).astype(jnp.bfloat16)
        probs = head(M, h, smask2, self.lin_w, self.lin_b)
        if with_aux:
            return probs, (perm1, perm2)
        return probs


# ------------------------------------------------------------------- f32 reference

def reference_forward(net, x, edge_index, nodes_per_graph, num_graphs, ratio=0.5,
                      perms=None):
    """Exact-f32 pure-JAX transliteration of the PyTorch Net.forward (PyG-style
    node compaction with explicit adjacency filtering).  `perms` (original node
    ids from the Pallas path) pins the top-k selection so that bf16-level score
    noise cannot flip near-tied selections between the two implementations."""
    N = x.shape[0]
    A = build_adjacency(edge_index, N)

    def layer(A, x, p):
        deg = jnp.maximum(jnp.sum(A, axis=1, keepdims=True), 1.0)
        h = ((A @ x) / deg) @ p["wl"] + p["bl"] + x @ p["wr"]
        mean = jnp.mean(h, axis=0, keepdims=True)
        var = jnp.mean((h - mean) ** 2, axis=0, keepdims=True)
        h = (h - mean) * jax.lax.rsqrt(var + 1e-5) * p["gamma"] + p["beta"]
        h = jnp.maximum(h, 0.0)
        score = jnp.tanh(A @ (h @ p["wrel"]) + p["brel"] + h @ p["wroot"])
        return h, score

    h, score = layer(A, x, net.raw[1])
    k1 = int(math.ceil(ratio * nodes_per_graph))
    if perms is None:
        _, idx = jax.lax.top_k(score[:, 0].reshape(num_graphs, nodes_per_graph), k1)
        perm1 = (idx + (jnp.arange(num_graphs) * nodes_per_graph)[:, None]).reshape(-1)
    else:
        perm1 = perms[0]
    h = h[perm1] * score[perm1]
    A = A[perm1][:, perm1]

    h, score = layer(A, h, net.raw[2])
    k2 = int(math.ceil(ratio * k1))
    if perms is None:
        _, idx = jax.lax.top_k(score[:, 0].reshape(num_graphs, k1), k2)
        pos2 = (idx + (jnp.arange(num_graphs) * k1)[:, None]).reshape(-1)
    else:
        pos2 = jnp.argmax(perm1[None, :] == perms[1][:, None], axis=1)
    h = h[pos2] * score[pos2]

    pooled = h.reshape(num_graphs, k2, -1).mean(axis=1)
    pooled = jnp.maximum(pooled, 0.0)
    lw, lb = net.raw["lin"]
    logits = pooled @ lw + lb
    e = jnp.exp(logits - jnp.max(logits, axis=1, keepdims=True))
    return e / jnp.sum(e, axis=1, keepdims=True)


# --------------------------------------------------------------------------- main

if __name__ == "__main__":
    in_feats = 4
    nodes_per_graph = 8
    num_graphs = 2
    N = nodes_per_graph * num_graphs

    x = jax.random.normal(jax.random.PRNGKey(0), (N, in_feats), jnp.float32)

    # deterministic graph: per-graph bidirectional ring + two bidirectional chords
    src, tgt = [], []
    for g in range(num_graphs):
        off = g * nodes_per_graph
        for i in range(nodes_per_graph):
            j = (i + 1) % nodes_per_graph
            src += [off + i, off + j]
            tgt += [off + j, off + i]
        for (a, b) in [(0, 3), (2, 6)]:
            src += [off + a, off + b]
            tgt += [off + b, off + a]
    edge_index = jnp.asarray(np.stack([src, tgt]), dtype=jnp.int32)

    net = Net(in_feats, jax.random.PRNGKey(1))
    out, perms = net.forward(x, edge_index, nodes_per_graph, num_graphs, with_aux=True)
    out = jax.block_until_ready(out)

    assert out.shape == (num_graphs, 2)
    assert bool(jnp.all(jnp.isfinite(out)))
    assert np.allclose(np.asarray(jnp.sum(out, axis=1)), 1.0, atol=1e-5)  # softmax rows

    # validate against the exact-f32 reference (tolerance sized for bf16 MXU
    # operands + approx reciprocal in the mean aggregation)
    ref = reference_forward(net, x, edge_index, nodes_per_graph, num_graphs,
                            perms=perms)
    assert np.allclose(np.asarray(out), np.asarray(ref), atol=5e-2), (
        float(np.abs(np.asarray(out) - np.asarray(ref)).max()))
    print("KERNEL_OK")
</pallas_src>

<mosaic_0001>
module attributes {stable_mosaic.version = 11 : i64} {
  func.func @layer_kernel(%arg0: memref<16x16xbf16, #tpu.memory_space<vmem>>, %arg1: memref<16x128xf32, #tpu.memory_space<vmem>>, %arg2: memref<16x1xf32, #tpu.memory_space<vmem>>, %arg3: memref<16x1xf32, #tpu.memory_space<vmem>>, %arg4: memref<128x128xbf16, #tpu.memory_space<vmem>>, %arg5: memref<128x128xbf16, #tpu.memory_space<vmem>>, %arg6: memref<1x128xf32, #tpu.memory_space<vmem>>, %arg7: memref<1x128xf32, #tpu.memory_space<vmem>>, %arg8: memref<1x128xf32, #tpu.memory_space<vmem>>, %arg9: memref<128x1xbf16, #tpu.memory_space<vmem>>, %arg10: memref<128x1xbf16, #tpu.memory_space<vmem>>, %arg11: memref<1x1xf32, #tpu.memory_space<vmem>>, %arg12: memref<16x128xf32, #tpu.memory_space<vmem>>, %arg13: memref<16x1xf32, #tpu.memory_space<vmem>>) attributes {dimension_semantics = [], scalar_prefetch = 0 : i64, scratch_operands = 0 : i64, tpu.core_type = #tpu.core_type<tc>} {
    %c0 = arith.constant 0 : index
    %c0_0 = arith.constant 0 : index
    %0 = vector.load %arg0[%c0, %c0_0] : memref<16x16xbf16, #tpu.memory_space<vmem>>, vector<16x16xbf16>
    %c0_1 = arith.constant 0 : index
    %c0_2 = arith.constant 0 : index
    %1 = vector.load %arg3[%c0_1, %c0_2] : memref<16x1xf32, #tpu.memory_space<vmem>>, vector<16x1xf32>
    %c0_3 = arith.constant 0 : index
    %c0_4 = arith.constant 0 : index
    %2 = vector.load %arg1[%c0_3, %c0_4] : memref<16x128xf32, #tpu.memory_space<vmem>>, vector<16x128xf32>
    %c0_5 = arith.constant 0 : index
    %c0_6 = arith.constant 0 : index
    %3 = vector.load %arg2[%c0_5, %c0_6] : memref<16x1xf32, #tpu.memory_space<vmem>>, vector<16x1xf32>
    %4 = vector.broadcast %3 : vector<16x1xf32> to vector<16x128xf32>
    %5 = arith.mulf %2, %4 : vector<16x128xf32>
    %6 = tpu.iota {dimensions = array<i32: 1>} : vector<16x128xi32>
    %c127_i32 = arith.constant 127 : i32
    %7 = vector.broadcast %c127_i32 : i32 to vector<16x128xi32>
    %8 = arith.cmpi eq, %6, %7 : vector<16x128xi32>
    %9 = vector.shape_cast %1 : vector<16x1xf32> to vector<16x1xf32>
    %10 = vector.broadcast %9 : vector<16x1xf32> to vector<16x128xf32>
    %11 = arith.select %8, %10, %5 : vector<16x128xi1>, vector<16x128xf32>
    %12 = arith.truncf %11 : vector<16x128xf32> to vector<16x128xbf16>
    %cst = arith.constant dense<0.000000e+00> : vector<16x128xf32>
    %13 = tpu.matmul %0, %12, %cst {dimension_numbers = #tpu.dot_dimension_numbers<[1], [0], [0], [1], [0, 0, 1, 1], [], []>} : vector<16x16xbf16>, vector<16x128xbf16>, vector<16x128xf32> -> vector<16x128xf32>
    %14 = vector.extract_strided_slice %13 {offsets = [0, 127], sizes = [16, 1], strides = [1, 1]} : vector<16x128xf32> to vector<16x1xf32>
    %cst_7 = arith.constant 1.000000e+00 : f32
    %15 = vector.broadcast %cst_7 : f32 to vector<16x1xf32>
    %16 = arith.maximumf %14, %15 : vector<16x1xf32>
    %17 = tpu.reciprocal %16 {approx = true} : vector<16x1xf32> -> vector<16x1xf32>
    %18 = vector.broadcast %17 : vector<16x1xf32> to vector<16x128xf32>
    %19 = arith.mulf %13, %18 : vector<16x128xf32>
    %20 = arith.truncf %19 : vector<16x128xf32> to vector<16x128xbf16>
    %c0_8 = arith.constant 0 : index
    %c0_9 = arith.constant 0 : index
    %21 = vector.load %arg4[%c0_8, %c0_9] : memref<128x128xbf16, #tpu.memory_space<vmem>>, vector<128x128xbf16>
    %cst_10 = arith.constant dense<0.000000e+00> : vector<16x128xf32>
    %22 = tpu.matmul %20, %21, %cst_10 {dimension_numbers = #tpu.dot_dimension_numbers<[1], [0], [0], [1], [0, 0, 1, 1], [], []>} : vector<16x128xbf16>, vector<128x128xbf16>, vector<16x128xf32> -> vector<16x128xf32>
    %c0_11 = arith.constant 0 : index
    %c0_12 = arith.constant 0 : index
    %23 = vector.load %arg5[%c0_11, %c0_12] : memref<128x128xbf16, #tpu.memory_space<vmem>>, vector<128x128xbf16>
    %cst_13 = arith.constant dense<0.000000e+00> : vector<16x128xf32>
    %24 = tpu.matmul %12, %23, %cst_13 {dimension_numbers = #tpu.dot_dimension_numbers<[1], [0], [0], [1], [0, 0, 1, 1], [], []>} : vector<16x128xbf16>, vector<128x128xbf16>, vector<16x128xf32> -> vector<16x128xf32>
    %25 = arith.addf %22, %24 : vector<16x128xf32>
    %c0_14 = arith.constant 0 : index
    %c0_15 = arith.constant 0 : index
    %26 = vector.load %arg6[%c0_14, %c0_15] : memref<1x128xf32, #tpu.memory_space<vmem>>, vector<1x128xf32>
    %27 = vector.broadcast %26 : vector<1x128xf32> to vector<16x128xf32>
    %28 = arith.addf %25, %27 : vector<16x128xf32>
    %29 = vector.broadcast %1 : vector<16x1xf32> to vector<16x128xf32>
    %30 = arith.mulf %28, %29 : vector<16x128xf32>
    %cst_16 = arith.constant dense<0.000000e+00> : vector<128xf32>
    %31 = vector.multi_reduction <add>, %30, %cst_16 [0] : vector<16x128xf32> to vector<128xf32>
    %32 = vector.shape_cast %31 : vector<128xf32> to vector<1x128xf32>
    %cst_17 = arith.constant 6.250000e-02 : f32
    %33 = vector.broadcast %cst_17 : f32 to vector<1x128xf32>
    %34 = arith.mulf %32, %33 : vector<1x128xf32>
    %35 = arith.mulf %30, %28 : vector<16x128xf32>
    %cst_18 = arith.constant dense<0.000000e+00> : vector<128xf32>
    %36 = vector.multi_reduction <add>, %35, %cst_18 [0] : vector<16x128xf32> to vector<128xf32>
    %37 = vector.shape_cast %36 : vector<128xf32> to vector<1x128xf32>
    %cst_19 = arith.constant 6.250000e-02 : f32
    %38 = vector.broadcast %cst_19 : f32 to vector<1x128xf32>
    %39 = arith.mulf %37, %38 : vector<1x128xf32>
    %40 = arith.mulf %34, %34 : vector<1x128xf32>
    %41 = arith.subf %39, %40 : vector<1x128xf32>
    %cst_20 = arith.constant 0.000000e+00 : f32
    %42 = vector.broadcast %cst_20 : f32 to vector<1x128xf32>
    %43 = arith.maximumf %41, %42 : vector<1x128xf32>
    %44 = vector.broadcast %34 : vector<1x128xf32> to vector<16x128xf32>
    %45 = arith.subf %28, %44 : vector<16x128xf32>
    %cst_21 = arith.constant 9.99999974E-6 : f32
    %46 = vector.broadcast %cst_21 : f32 to vector<1x128xf32>
    %47 = arith.addf %43, %46 : vector<1x128xf32>
    %48 = math.rsqrt %47 : vector<1x128xf32>
    %49 = vector.broadcast %48 : vector<1x128xf32> to vector<16x128xf32>
    %50 = arith.mulf %45, %49 : vector<16x128xf32>
    %c0_22 = arith.constant 0 : index
    %c0_23 = arith.constant 0 : index
    %51 = vector.load %arg7[%c0_22, %c0_23] : memref<1x128xf32, #tpu.memory_space<vmem>>, vector<1x128xf32>
    %52 = vector.broadcast %51 : vector<1x128xf32> to vector<16x128xf32>
    %53 = arith.mulf %50, %52 : vector<16x128xf32>
    %c0_24 = arith.constant 0 : index
    %c0_25 = arith.constant 0 : index
    %54 = vector.load %arg8[%c0_24, %c0_25] : memref<1x128xf32, #tpu.memory_space<vmem>>, vector<1x128xf32>
    %55 = vector.broadcast %54 : vector<1x128xf32> to vector<16x128xf32>
    %56 = arith.addf %53, %55 : vector<16x128xf32>
    %cst_26 = arith.constant 0.000000e+00 : f32
    %57 = vector.broadcast %cst_26 : f32 to vector<16x128xf32>
    %58 = arith.maximumf %56, %57 : vector<16x128xf32>
    %c0_27 = arith.constant 0 : index
    %c0_28 = arith.constant 0 : index
    %59 = vector.load %arg12[%c0_27, %c0_28] : memref<16x128xf32, #tpu.memory_space<vmem>>, vector<16x128xf32>
    tpu.vector_store %arg12[%c0_27, %c0_28], %58 {strides = array<i32>} : memref<16x128xf32, #tpu.memory_space<vmem>>, vector<16x128xf32>,
    %60 = arith.truncf %58 : vector<16x128xf32> to vector<16x128xbf16>
    %c0_29 = arith.constant 0 : index
    %c0_30 = arith.constant 0 : index
    %61 = vector.load %arg9[%c0_29, %c0_30] : memref<128x1xbf16, #tpu.memory_space<vmem>>, vector<128x1xbf16>
    %cst_31 = arith.constant dense<0.000000e+00> : vector<16x1xf32>
    %62 = tpu.matmul %60, %61, %cst_31 {dimension_numbers = #tpu.dot_dimension_numbers<[1], [0], [0], [1], [0, 0, 1, 1], [], []>} : vector<16x128xbf16>, vector<128x1xbf16>, vector<16x1xf32> -> vector<16x1xf32>
    %63 = arith.mulf %62, %1 : vector<16x1xf32>
    %c0_32 = arith.constant 0 : index
    %c0_33 = arith.constant 0 : index
    %64 = vector.load %arg10[%c0_32, %c0_33] : memref<128x1xbf16, #tpu.memory_space<vmem>>, vector<128x1xbf16>
    %cst_34 = arith.constant dense<0.000000e+00> : vector<16x1xf32>
    %65 = tpu.matmul %60, %64, %cst_34 {dimension_numbers = #tpu.dot_dimension_numbers<[1], [0], [0], [1], [0, 0, 1, 1], [], []>} : vector<16x128xbf16>, vector<128x1xbf16>, vector<16x1xf32> -> vector<16x1xf32>
    %66 = arith.truncf %63 : vector<16x1xf32> to vector<16x1xbf16>
    %cst_35 = arith.constant dense<0.000000e+00> : vector<16x1xf32>
    %67 = tpu.matmul %0, %66, %cst_35 {dimension_numbers = #tpu.dot_dimension_numbers<[1], [0], [0], [1], [0, 0, 1, 1], [], []>} : vector<16x16xbf16>, vector<16x1xbf16>, vector<16x1xf32> -> vector<16x1xf32>
    %68 = arith.addf %67, %65 : vector<16x1xf32>
    %c0_36 = arith.constant 0 : index
    %c0_37 = arith.constant 0 : index
    %69 = vector.load %arg11[%c0_36, %c0_37] : memref<1x1xf32, #tpu.memory_space<vmem>>, vector<1x1xf32>
    %70 = vector.broadcast %69 : vector<1x1xf32> to vector<16x1xf32>
    %71 = arith.addf %68, %70 : vector<16x1xf32>
    %72 = math.tanh %71 : vector<16x1xf32>
    %c0_38 = arith.constant 0 : index
    %c0_39 = arith.constant 0 : index
    %73 = vector.load %arg13[%c0_38, %c0_39] : memref<16x1xf32, #tpu.memory_space<vmem>>, vector<16x1xf32>
    tpu.vector_store %arg13[%c0_38, %c0_39], %72 {strides = array<i32>} : memref<16x1xf32, #tpu.memory_space<vmem>>, vector<16x1xf32>,
    return
  }
}

</mosaic_0001>

<llo_original>
// kernel: tpu_custom_call.1
$region0: #{tpu_custom_call.1}
  #allocation0 [shape = 'u32[]', space=smem, size = 0x4, offset = 0x4, fixed_abs, tag = 'smem constant byte address 0x4 - core index']
  #allocation1 [shape = 'u32[72,128]{1,0:T(1,128)}', space=vmem, size = 0x9000, scoped, tag = 'internal scratch']
  #allocation2 [shape = 'f32[1,1]{1,0:T(1,128)S(1)}', space=vmem, size = 0x200, scoped, tag = 'scoped memory for tpu_custom_call.1']
  %s0 = inlined_call_operand.vmem [shape: bf16[16,16], index: 0, kind: input, shape index: {}]
  %s1 = inlined_call_operand.vmem [shape: f32[16,128], index: 1, kind: input, shape index: {}]
  %s2 = inlined_call_operand.vmem [shape: f32[16,1], index: 2, kind: input, shape index: {}]
  %s3 = inlined_call_operand.vmem [shape: f32[16,1], index: 3, kind: input, shape index: {}]
  %s4 = inlined_call_operand.vmem [shape: bf16[128,128], index: 4, kind: input, shape index: {}]
  %s5 = inlined_call_operand.vmem [shape: bf16[128,128], index: 5, kind: input, shape index: {}]
  %s6 = inlined_call_operand.vmem [shape: f32[1,128], index: 6, kind: input, shape index: {}]
  %s7 = inlined_call_operand.vmem [shape: f32[1,128], index: 7, kind: input, shape index: {}]
  %s8 = inlined_call_operand.vmem [shape: f32[1,128], index: 8, kind: input, shape index: {}]
  %s9 = inlined_call_operand.vmem [shape: bf16[128,1], index: 9, kind: input, shape index: {}]
  %s10 = inlined_call_operand.vmem [shape: bf16[128,1], index: 10, kind: input, shape index: {}]
  %s11 = inlined_call_operand.<no memory space> [shape: f32[1,1], index: 11, kind: input, shape index: {}]
  %s12 = inlined_call_operand.hbm [shape: f32[16,128], index: 12, kind: output, shape index: {0}]
  %s13 = inlined_call_operand.vmem [shape: f32[16,1], index: 13, kind: output, shape index: {1}]
  %14 = xla_tuple %s12, %s13
  %s15 = sld [smem:[#allocation0]]
  $region66: #{tpu_custom_call.1} parent=0
    _
  %s17 = ssub.s32 1, %s15
  %s18 = scalar_select 0, %s17, %s15
  %v19 = vstv %s11
  %20 = vst [vmem:[#allocation2] sm:$0x1] %v19
  $region1: #{tpu_custom_call.1} parent=0
    #allocation3 [shape = 'u8[8192]{0}', space=vmem, size = 0x2000, scoped, tag = 'output window, operand 0, single buffered']
    #allocation4 [shape = 's32[1]{0}', space=sflag, size = 0x4, scoped, tag = 'scoped memory for tpu_custom_call.1']
    %21 = vsyncpa [#allocation4], 0
    // Predicated region
    $region2: #{tpu_custom_call.1} parent=1 // pred_check
      _
    $region3: #{tpu_custom_call.1} parent=1 // pred_check_branch
      %23 = sbr.rel (0) target = $region5
    $region4: #{tpu_custom_call.1} parent=1 // pred_region
      _
    $region5: #{tpu_custom_call.1} parent=1 // pred_fallthru
      _
    // Predicated region
    $region6: #{tpu_custom_call.1} parent=1 // pred_check
      _
    $region7: #{tpu_custom_call.1} parent=1 // pred_check_branch
      %25 = sbr.rel (0) target = $region9
    $region8: #{tpu_custom_call.1} parent=1 // pred_region
      _
    $region9: #{tpu_custom_call.1} parent=1 // pred_fallthru
      _
    // Predicated region
    $region10: #{tpu_custom_call.1} parent=1 // pred_check
      _
    $region11: #{tpu_custom_call.1} parent=1 // pred_check_branch
      %27 = sbr.rel (0) target = $region13
    $region12: #{tpu_custom_call.1} parent=1 // pred_region
      _
    $region13: #{tpu_custom_call.1} parent=1 // pred_fallthru
      _
    // Predicated region
    $region14: #{tpu_custom_call.1} parent=1 // pred_check
      _
    $region15: #{tpu_custom_call.1} parent=1 // pred_check_branch
      %29 = sbr.rel (0) target = $region17
    $region16: #{tpu_custom_call.1} parent=1 // pred_region
      _
    $region17: #{tpu_custom_call.1} parent=1 // pred_fallthru
      _
    // Predicated region
    $region18: #{tpu_custom_call.1} parent=1 // pred_check
      _
    $region19: #{tpu_custom_call.1} parent=1 // pred_check_branch
      %31 = sbr.rel (0) target = $region21
    $region20: #{tpu_custom_call.1} parent=1 // pred_region
      _
    $region21: #{tpu_custom_call.1} parent=1 // pred_fallthru
      _
    // Predicated region
    $region22: #{tpu_custom_call.1} parent=1 // pred_check
      _
    $region23: #{tpu_custom_call.1} parent=1 // pred_check_branch
      %33 = sbr.rel (0) target = $region25
    $region24: #{tpu_custom_call.1} parent=1 // pred_region
      _
    $region25: #{tpu_custom_call.1} parent=1 // pred_fallthru
      _
    // Predicated region
    $region26: #{tpu_custom_call.1} parent=1 // pred_check
      _
    $region27: #{tpu_custom_call.1} parent=1 // pred_check_branch
      %35 = sbr.rel (0) target = $region29
    $region28: #{tpu_custom_call.1} parent=1 // pred_region
      _
    $region29: #{tpu_custom_call.1} parent=1 // pred_fallthru
      _
    // Predicated region
    $region30: #{tpu_custom_call.1} parent=1 // pred_check
      _
    $region31: #{tpu_custom_call.1} parent=1 // pred_check_branch
      %37 = sbr.rel (0) target = $region33
    $region32: #{tpu_custom_call.1} parent=1 // pred_region
      _
    $region33: #{tpu_custom_call.1} parent=1 // pred_fallthru
      _
    // Predicated region
    $region34: #{tpu_custom_call.1} parent=1 // pred_check
      _
    $region35: #{tpu_custom_call.1} parent=1 // pred_check_branch
      %39 = sbr.rel (0) target = $region37
    $region36: #{tpu_custom_call.1} parent=1 // pred_region
      _
    $region37: #{tpu_custom_call.1} parent=1 // pred_fallthru
      _
    // Predicated region
    $region38: #{tpu_custom_call.1} parent=1 // pred_check
      _
    $region39: #{tpu_custom_call.1} parent=1 // pred_check_branch
      %41 = sbr.rel (0) target = $region41
    $region40: #{tpu_custom_call.1} parent=1 // pred_region
      _
    $region41: #{tpu_custom_call.1} parent=1 // pred_fallthru
      _
    // Predicated region
    $region42: #{tpu_custom_call.1} parent=1 // pred_check
      _
    $region43: #{tpu_custom_call.1} parent=1 // pred_check_branch
      %43 = sbr.rel (0) target = $region45
    $region44: #{tpu_custom_call.1} parent=1 // pred_region
      _
    $region45: #{tpu_custom_call.1} parent=1 // pred_fallthru
      _
    // Predicated region
    $region46: #{tpu_custom_call.1} parent=1 // pred_check
      _
    $region47: #{tpu_custom_call.1} parent=1 // pred_check_branch
      %45 = sbr.rel (0) target = $region49
    $region48: #{tpu_custom_call.1} parent=1 // pred_region
      _
    $region49: #{tpu_custom_call.1} parent=1 // pred_fallthru
      _
    %v47 = vld [vmem:[%s0] sm:$0xf]
    %v48 = vld [vmem:[%s0 + $0x4] sm:$0xf]
    %v49 = vld [vmem:[%s3] sm:$0xff]
    %v50 = vld [vmem:[%s3 + $0x8] sm:$0xff]
    %v51 = vld [vmem:[%s1] sm:$0xff]
    %v52 = vld [vmem:[%s1 + $0x8] sm:$0xff]
    %v53 = vld [vmem:[%s2] sm:$0xff]
    %v54 = vld [vmem:[%s2 + $0x8] sm:$0xff]
    %56 = vset.pattern.permute.xlu0 0
    %57 = vperm.xlu0 %56, %v53
    %v58 = vpop.permute.xlu0 %57
    %61 = vset.pattern.permute.xlu0 0
    %62 = vperm.xlu0 %61, %v54
    %v63 = vpop.permute.xlu0 %62
    %v65 = vmul.f32 %v51, %v58
    %v66 = vmul.f32 %v52, %v63
    %v67 = vlaneseq
    %v68 = vand.u32 %v67, 127
    %vm69 = vcmp.eq.s32.totalorder %v68, 127
    %71 = vset.pattern.permute.xlu0 0
    %72 = vperm.xlu0 %71, %v49
    %v73 = vpop.permute.xlu0 %72
    %76 = vset.pattern.permute.xlu0 0
    %77 = vperm.xlu0 %76, %v50
    %v78 = vpop.permute.xlu0 %77
    %v80 = vsel %vm69, %v73, %v65
    %v81 = vsel %vm69, %v78, %v66
    %v82 = vpack.c.bf16 %v81, %v80
    %v85 = vunpack.c.l.b16 %v47
    %v86 = vunpack.c.l.b16 %v48
    %v87 = vpack.c.b16 %v86, %v85
    %vm88 = vcmask 130048
    %v90 = vsel %vm88, %v87, 0
    %92 = vmatpush.bf16.msra.mxu0 0
    %93 = vmatpush.bf16.msra.mxu0 0
    %94 = vmatpush.bf16.msra.mxu0 0
    %95 = vmatpush.bf16.msra.mxu0 0
    %96 = vmatpush.bf16.msra.mxu0 0
    %97 = vmatpush.bf16.msra.mxu0 0
    %98 = vmatpush.bf16.msra.mxu0 0
    %99 = vmatpush.bf16.msra.mxu0 %v82
    %100 = vmatmul.bf16.gmra.mxu0 %v90
    %v101 = vpop.f32.mrf.mxu0
    %v102 = vadd.f32 0.0, %v101
    %v103 = vpop.f32.mrf.mxu0
    %v104 = vadd.f32 0.0, %v103
    %105 = vdwg.mxu0
    %v106 = vmax.f32 %v102, 1.0
    %v107 = vmax.f32 %v104, 1.0
    %v108 = vrcp.pop %v106
    %v109 = vrcp.pop %v107
    %111 = vset.pattern.permute.xlu0 127
    %112 = vperm.xlu0 %111, %v108
    %v113 = vpop.permute.xlu0 %112
    %116 = vset.pattern.permute.xlu0 127
    %117 = vperm.xlu0 %116, %v109
    %v118 = vpop.permute.xlu0 %117
    %v120 = vmul.f32 %v102, %v113
    %v121 = vmul.f32 %v104, %v118
    %v122 = vpack.c.bf16 %v121, %v120
    %v123 = vld [vmem:[%s4] sm:$0xf]
    %v124 = vld [vmem:[%s4 + $0x4] sm:$0xf]
    %v125 = vld [vmem:[%s4 + $0x8] sm:$0xf]
    %v126 = vld [vmem:[%s4 + $0xc] sm:$0xf]
    %v127 = vld [vmem:[%s4 + $0x10] sm:$0xf]
    %v128 = vld [vmem:[%s4 + $0x14] sm:$0xf]
    %v129 = vld [vmem:[%s4 + $0x18] sm:$0xf]
    %v130 = vld [vmem:[%s4 + $0x1c] sm:$0xf]
    %v131 = vld [vmem:[%s4 + $0x20] sm:$0xf]
    %v132 = vld [vmem:[%s4 + $0x24] sm:$0xf]
    %v133 = vld [vmem:[%s4 + $0x28] sm:$0xf]
    %v134 = vld [vmem:[%s4 + $0x2c] sm:$0xf]
    %v135 = vld [vmem:[%s4 + $0x30] sm:$0xf]
    %v136 = vld [vmem:[%s4 + $0x34] sm:$0xf]
    %v137 = vld [vmem:[%s4 + $0x38] sm:$0xf]
    %v138 = vld [vmem:[%s4 + $0x3c] sm:$0xf]
    %v139 = vld [vmem:[%s5] sm:$0xf]
    %v140 = vld [vmem:[%s5 + $0x4] sm:$0xf]
    %v141 = vld [vmem:[%s5 + $0x8] sm:$0xf]
    %v142 = vld [vmem:[%s5 + $0xc] sm:$0xf]
    %v143 = vld [vmem:[%s5 + $0x10] sm:$0xf]
    %v144 = vld [vmem:[%s5 + $0x14] sm:$0xf]
    %v145 = vld [vmem:[%s5 + $0x18] sm:$0xf]
    %v146 = vld [vmem:[%s5 + $0x1c] sm:$0xf]
    %v147 = vld [vmem:[%s5 + $0x20] sm:$0xf]
    %v148 = vld [vmem:[%s5 + $0x24] sm:$0xf]
    %v149 = vld [vmem:[%s5 + $0x28] sm:$0xf]
    %v150 = vld [vmem:[%s5 + $0x2c] sm:$0xf]
    %v151 = vld [vmem:[%s5 + $0x30] sm:$0xf]
    %v152 = vld [vmem:[%s5 + $0x34] sm:$0xf]
    %v153 = vld [vmem:[%s5 + $0x38] sm:$0xf]
    %v154 = vld [vmem:[%s5 + $0x3c] sm:$0xf]
    %v171 = vunpack.c.l.b16 %v139
    %v172 = vunpack.c.l.b16 %v140
    %v173 = vunpack.c.l.b16 %v141
    %v174 = vunpack.c.l.b16 %v142
    %v175 = vunpack.c.l.b16 %v143
    %v176 = vunpack.c.l.b16 %v144
    %v177 = vunpack.c.l.b16 %v145
    %v178 = vunpack.c.l.b16 %v146
    %v179 = vunpack.c.l.b16 %v147
    %v180 = vunpack.c.l.b16 %v148
    %v181 = vunpack.c.l.b16 %v149
    %v182 = vunpack.c.l.b16 %v150
    %v183 = vunpack.c.l.b16 %v151
    %v184 = vunpack.c.l.b16 %v152
    %v185 = vunpack.c.l.b16 %v153
    %v186 = vunpack.c.l.b16 %v154
    %v187 = vpack.c.b16 %v172, %v171
    %v188 = vpack.c.b16 %v174, %v173
    %v189 = vpack.c.b16 %v176, %v175
    %v190 = vpack.c.b16 %v178, %v177
    %v191 = vpack.c.b16 %v180, %v179
    %v192 = vpack.c.b16 %v182, %v181
    %v193 = vpack.c.b16 %v184, %v183
    %v194 = vpack.c.b16 %v186, %v185
    %203 = vmatpush.bf16.msra.mxu0 %v194
    %204 = vmatpush.bf16.msra.mxu0 %v193
    %205 = vmatpush.bf16.msra.mxu0 %v192
    %206 = vmatpush.bf16.msra.mxu0 %v191
    %207 = vmatpush.bf16.msra.mxu0 %v190
    %208 = vmatpush.bf16.msra.mxu0 %v189
    %209 = vmatpush.bf16.msra.mxu0 %v188
    %210 = vmatpush.bf16.msra.mxu0 %v187
    %211 = vmatmul.bf16.gmra.mxu0 %v82
    %v212 = vpop.f32.mrf.mxu0
    %v213 = vadd.f32 0.0, %v212
    %v214 = vpop.f32.mrf.mxu0
    %v215 = vadd.f32 0.0, %v214
    %216 = vdwg.mxu0
    %v233 = vunpack.c.l.b16 %v123
    %v234 = vunpack.c.l.b16 %v124
    %v235 = vunpack.c.l.b16 %v125
    %v236 = vunpack.c.l.b16 %v126
    %v237 = vunpack.c.l.b16 %v127
    %v238 = vunpack.c.l.b16 %v128
    %v239 = vunpack.c.l.b16 %v129
    %v240 = vunpack.c.l.b16 %v130
    %v241 = vunpack.c.l.b16 %v131
    %v242 = vunpack.c.l.b16 %v132
    %v243 = vunpack.c.l.b16 %v133
    %v244 = vunpack.c.l.b16 %v134
    %v245 = vunpack.c.l.b16 %v135
    %v246 = vunpack.c.l.b16 %v136
    %v247 = vunpack.c.l.b16 %v137
    %v248 = vunpack.c.l.b16 %v138
    %v249 = vpack.c.b16 %v234, %v233
    %v250 = vpack.c.b16 %v236, %v235
    %v251 = vpack.c.b16 %v238, %v237
    %v252 = vpack.c.b16 %v240, %v239
    %v253 = vpack.c.b16 %v242, %v241
    %v254 = vpack.c.b16 %v244, %v243
    %v255 = vpack.c.b16 %v246, %v245
    %v256 = vpack.c.b16 %v248, %v247
    %265 = vmatpush.bf16.msra.mxu0 %v256
    %266 = vmatpush.bf16.msra.mxu0 %v255
    %267 = vmatpush.bf16.msra.mxu0 %v254
    %268 = vmatpush.bf16.msra.mxu0 %v253
    %269 = vmatpush.bf16.msra.mxu0 %v252
    %270 = vmatpush.bf16.msra.mxu0 %v251
    %271 = vmatpush.bf16.msra.mxu0 %v250
    %272 = vmatpush.bf16.msra.mxu0 %v249
    %273 = vmatmul.bf16.gmra.mxu0 %v122
    %v274 = vpop.f32.mrf.mxu0
    %v275 = vadd.f32 %v213, %v274
    %v276 = vpop.f32.mrf.mxu0
    %v277 = vadd.f32 %v215, %v276
    %278 = vdwg.mxu0
    %v279 = vld [vmem:[%s6] sm:$0x1]
    %v281 = vperm.slane %v279, 0
    %v283 = vadd.f32 %v275, %v281
    %v284 = vadd.f32 %v277, %v281
    %v285 = vmul.f32 %v283, %v73
    %v286 = vmul.f32 %v284, %v78
    %v287 = vadd.f32 %v285, %v286
    %v288 = vrot.slane %v287, 4
    %v289 = vadd.f32 %v287, %v288
    %v290 = vrot.slane %v289, 2
    %v291 = vadd.f32 %v289, %v290
    %v292 = vrot.slane %v291, 1
    %v293 = vadd.f32 %v291, %v292
    %v294 = vmul.f32 %v293, 0.0625
    %v295 = vmul.f32 %v285, %v283
    %v296 = vmul.f32 %v286, %v284
    %v297 = vadd.f32 %v295, %v296
    %v298 = vrot.slane %v297, 4
    %v299 = vadd.f32 %v297, %v298
    %v300 = vrot.slane %v299, 2
    %v301 = vadd.f32 %v299, %v300
    %v302 = vrot.slane %v301, 1
    %v303 = vadd.f32 %v301, %v302
    %v304 = vmul.f32 %v303, 0.0625
    %v305 = vmul.f32 %v294, %v294
    %v306 = vsub.f32 %v304, %v305
    %v307 = vmax.f32 %v306, 0.0
    %v308 = vsub.f32 %v283, %v294
    %v309 = vsub.f32 %v284, %v294
    %v310 = vadd.f32 %v307, 1e-05
    %v311 = vrsqrt.pop %v310
    %v312 = vmul.f32 %v311, %v310
    %v313 = vmul.f32 %v312, %v311
    %v314 = vmul.f32 0.5, %v313
    %v315 = vsub.f32 1.5, %v314
    %v316 = vmul.f32 %v311, %v315
    %vm317 = vweird.f32 %v310
    %vm318 = vweird.f32 %v311
    %vm319 = vmor %vm317, %vm318
    %v320 = vsel %vm319, %v311, %v316
    %v321 = vmul.f32 %v308, %v320
    %v322 = vmul.f32 %v309, %v320
    %v323 = vld [vmem:[%s7] sm:$0x1]
    %v325 = vperm.slane %v323, 0
    %v327 = vmul.f32 %v321, %v325
    %v328 = vmul.f32 %v322, %v325
    %v329 = vld [vmem:[%s8] sm:$0x1]
    %v331 = vperm.slane %v329, 0
    %v333 = vadd.f32 %v327, %v331
    %v334 = vadd.f32 %v328, %v331
    %v335 = vmax.f32 %v333, 0.0
    %v336 = vmax.f32 %v334, 0.0
    %337 = vst [vmem:[#allocation3] sm:$0xff] %v335
    %338 = vst [vmem:[#allocation3 + $0x8] sm:$0xff] %v336
    %v339 = vpack.c.bf16 %v336, %v335
    %v340 = vld [vmem:[%s9] sm:$0xf]
    %v341 = vld [vmem:[%s9 + $0x4] sm:$0xf]
    %v342 = vld [vmem:[%s9 + $0x8] sm:$0xf]
    %v343 = vld [vmem:[%s9 + $0xc] sm:$0xf]
    %v344 = vld [vmem:[%s9 + $0x10] sm:$0xf]
    %v345 = vld [vmem:[%s9 + $0x14] sm:$0xf]
    %v346 = vld [vmem:[%s9 + $0x18] sm:$0xf]
    %v347 = vld [vmem:[%s9 + $0x1c] sm:$0xf]
    %v348 = vld [vmem:[%s9 + $0x20] sm:$0xf]
    %v349 = vld [vmem:[%s9 + $0x24] sm:$0xf]
    %v350 = vld [vmem:[%s9 + $0x28] sm:$0xf]
    %v351 = vld [vmem:[%s9 + $0x2c] sm:$0xf]
    %v352 = vld [vmem:[%s9 + $0x30] sm:$0xf]
    %v353 = vld [vmem:[%s9 + $0x34] sm:$0xf]
    %v354 = vld [vmem:[%s9 + $0x38] sm:$0xf]
    %v355 = vld [vmem:[%s9 + $0x3c] sm:$0xf]
    %v372 = vunpack.c.l.b16 %v340
    %v373 = vunpack.c.l.b16 %v341
    %v374 = vunpack.c.l.b16 %v342
    %v375 = vunpack.c.l.b16 %v343
    %v376 = vunpack.c.l.b16 %v344
    %v377 = vunpack.c.l.b16 %v345
    %v378 = vunpack.c.l.b16 %v346
    %v379 = vunpack.c.l.b16 %v347
    %v380 = vunpack.c.l.b16 %v348
    %v381 = vunpack.c.l.b16 %v349
    %v382 = vunpack.c.l.b16 %v350
    %v383 = vunpack.c.l.b16 %v351
    %v384 = vunpack.c.l.b16 %v352
    %v385 = vunpack.c.l.b16 %v353
    %v386 = vunpack.c.l.b16 %v354
    %v387 = vunpack.c.l.b16 %v355
    %v388 = vpack.c.b16 %v373, %v372
    %v389 = vpack.c.b16 %v375, %v374
    %v390 = vpack.c.b16 %v377, %v376
    %v391 = vpack.c.b16 %v379, %v378
    %v392 = vpack.c.b16 %v381, %v380
    %v393 = vpack.c.b16 %v383, %v382
    %v394 = vpack.c.b16 %v385, %v384
    %v395 = vpack.c.b16 %v387, %v386
    %404 = vmatpush.bf16.msra.mxu0 %v395
    %405 = vmatpush.bf16.msra.mxu0 %v394
    %406 = vmatpush.bf16.msra.mxu0 %v393
    %407 = vmatpush.bf16.msra.mxu0 %v392
    %408 = vmatpush.bf16.msra.mxu0 %v391
    %409 = vmatpush.bf16.msra.mxu0 %v390
    %410 = vmatpush.bf16.msra.mxu0 %v389
    %411 = vmatpush.bf16.msra.mxu0 %v388
    %412 = vmatmul.bf16.gmra.mxu0 %v339
    %v413 = vpop.f32.mrf.mxu0
    %v414 = vadd.f32 0.0, %v413
    %v415 = vpop.f32.mrf.mxu0
    %v416 = vadd.f32 0.0, %v415
    %417 = vdwg.mxu0
    %v418 = vmul.f32 %v414, %v49
    %v419 = vmul.f32 %v416, %v50
    %v420 = vld [vmem:[%s10] sm:$0xf]
    %v421 = vld [vmem:[%s10 + $0x4] sm:$0xf]
    %v422 = vld [vmem:[%s10 + $0x8] sm:$0xf]
    %v423 = vld [vmem:[%s10 + $0xc] sm:$0xf]
    %v424 = vld [vmem:[%s10 + $0x10] sm:$0xf]
    %v425 = vld [vmem:[%s10 + $0x14] sm:$0xf]
    %v426 = vld [vmem:[%s10 + $0x18] sm:$0xf]
    %v427 = vld [vmem:[%s10 + $0x1c] sm:$0xf]
    %v428 = vld [vmem:[%s10 + $0x20] sm:$0xf]
    %v429 = vld [vmem:[%s10 + $0x24] sm:$0xf]
    %v430 = vld [vmem:[%s10 + $0x28] sm:$0xf]
    %v431 = vld [vmem:[%s10 + $0x2c] sm:$0xf]
    %v432 = vld [vmem:[%s10 + $0x30] sm:$0xf]
    %v433 = vld [vmem:[%s10 + $0x34] sm:$0xf]
    %v434 = vld [vmem:[%s10 + $0x38] sm:$0xf]
    %v435 = vld [vmem:[%s10 + $0x3c] sm:$0xf]
    %v452 = vunpack.c.l.b16 %v420
    %v453 = vunpack.c.l.b16 %v421
    %v454 = vunpack.c.l.b16 %v422
    %v455 = vunpack.c.l.b16 %v423
    %v456 = vunpack.c.l.b16 %v424
    %v457 = vunpack.c.l.b16 %v425
    %v458 = vunpack.c.l.b16 %v426
    %v459 = vunpack.c.l.b16 %v427
    %v460 = vunpack.c.l.b16 %v428
    %v461 = vunpack.c.l.b16 %v429
    %v462 = vunpack.c.l.b16 %v430
    %v463 = vunpack.c.l.b16 %v431
    %v464 = vunpack.c.l.b16 %v432
    %v465 = vunpack.c.l.b16 %v433
    %v466 = vunpack.c.l.b16 %v434
    %v467 = vunpack.c.l.b16 %v435
    %v468 = vpack.c.b16 %v453, %v452
    %v469 = vpack.c.b16 %v455, %v454
    %v470 = vpack.c.b16 %v457, %v456
    %v471 = vpack.c.b16 %v459, %v458
    %v472 = vpack.c.b16 %v461, %v460
    %v473 = vpack.c.b16 %v463, %v462
    %v474 = vpack.c.b16 %v465, %v464
    %v475 = vpack.c.b16 %v467, %v466
    %484 = vmatpush.bf16.msra.mxu0 %v475
    %485 = vmatpush.bf16.msra.mxu0 %v474
    %486 = vmatpush.bf16.msra.mxu0 %v473
    %487 = vmatpush.bf16.msra.mxu0 %v472
    %488 = vmatpush.bf16.msra.mxu0 %v471
    %489 = vmatpush.bf16.msra.mxu0 %v470
    %490 = vmatpush.bf16.msra.mxu0 %v469
    %491 = vmatpush.bf16.msra.mxu0 %v468
    %492 = vmatmul.bf16.gmra.mxu0 %v339
    %v493 = vpop.f32.mrf.mxu0
    %v494 = vadd.f32 0.0, %v493
    %v495 = vpop.f32.mrf.mxu0
    %v496 = vadd.f32 0.0, %v495
    %497 = vdwg.mxu0
    %v498 = vpack.c.bf16 %v419, %v418
    %499 = vmatpush.bf16.msra.mxu0 0
    %500 = vmatpush.bf16.msra.mxu0 0
    %501 = vmatpush.bf16.msra.mxu0 0
    %502 = vmatpush.bf16.msra.mxu0 0
    %503 = vmatpush.bf16.msra.mxu0 0
    %504 = vmatpush.bf16.msra.mxu0 0
    %505 = vmatpush.bf16.msra.mxu0 0
    %506 = vmatpush.bf16.msra.mxu0 %v498
    %507 = vmatmul.bf16.gmra.mxu0 %v90
    %v508 = vpop.f32.mrf.mxu0
    %v509 = vadd.f32 %v494, %v508
    %v510 = vpop.f32.mrf.mxu0
    %v511 = vadd.f32 %v496, %v510
    %512 = vdwg.mxu0
    %v513 = vld [vmem:[#allocation2] sm:$0x1]
    %v515 = vperm.slane %v513, 0
    %v517 = vadd.f32 %v509, %v515
    %v518 = vadd.f32 %v511, %v515
    %v519 = vtanh.pop %v517
    %v520 = vtanh.pop %v518
    %vm521 = vcmask 7168
    %522 = vst.msk [vmem:[%s13] sm:$0xff] %vm521, %v519
    %523 = vst.msk [vmem:[%s13 + $0x8] sm:$0xff] %vm521, %v520
    // Predicated region
    $region50: #{tpu_custom_call.1} parent=1 // pred_check
      _
    $region51: #{tpu_custom_call.1} parent=1 // pred_check_branch
      %525 = sbr.rel (0) target = $region53
    $region52: #{tpu_custom_call.1} parent=1 // pred_region
      %527 = vsyncadd [#allocation4], 0
      %s528 = sshll.u32 [#allocation3], 4
      %s529 = int_to_ptr.vmem [resolvable:$true] %s528
      %s530 = sshll.u32 %s12, 4
      %s531 = int_to_ptr.hbm [resolvable:$true] %s530
      %536 = dma.vmem_to_hbm [thread:$0]  %s529, 256, %s531, [#allocation4], 128, 128, 8
    $region53: #{tpu_custom_call.1} parent=1 // pred_fallthru
      _
    // Predicated region
    $region54: #{tpu_custom_call.1} parent=1 // pred_check
      _
    $region55: #{tpu_custom_call.1} parent=1 // pred_check_branch
      %538 = sbr.rel (0) target = $region57
    $region56: #{tpu_custom_call.1} parent=1 // pred_region
      _
    $region57: #{tpu_custom_call.1} parent=1 // pred_fallthru
      _
    // Predicated region
    $region58: #{tpu_custom_call.1} parent=1 // pred_check
      _
    $region59: #{tpu_custom_call.1} parent=1 // pred_check_branch
      %540 = sbr.rel (0) target = $region61
    $region60: #{tpu_custom_call.1} parent=1 // pred_region
      %542 = dma.done [#allocation4], 256
    $region61: #{tpu_custom_call.1} parent=1 // pred_fallthru
      _
    // Predicated region
    $region62: #{tpu_custom_call.1} parent=1 // pred_check
      _
    $region63: #{tpu_custom_call.1} parent=1 // pred_check_branch
      %544 = sbr.rel (0) target = $region65
    $region64: #{tpu_custom_call.1} parent=1 // pred_region
      _
    $region65: #{tpu_custom_call.1} parent=1 // pred_fallthru
      _
    %545 = vsyncpa [#allocation4], 1

</llo_original>
